<compile_context>
chip_gen: v7x
topology: tpu7x:2x2x1
jax: 0.10.0
libtpu: 0.0.40
codegen_flags: <defaults>
</compile_context>

<pallas_src>
import jax
import jax.numpy as jnp
import numpy as np
from jax.experimental import pallas as pl
from jax.experimental.pallas import tpu as pltpu  # noqa: F401  (TPU backend)


def critic_kernel(s_ref, a_ref, w1_ref, w2v2_ref, p_ref, b3c3_ref, q_ref):
    H = w2v2_ref.shape[1]  # hidden width (256)

    # ---- Layer 1 (both heads fused along N): one K=in_dim dot.
    # Lane-concat s|a in f32 (cheap in-vreg), cast operands to bf16 for the
    # native MXU path, accumulate in f32.
    x16 = jnp.concatenate([s_ref[...], a_ref[...]], axis=1).astype(jnp.bfloat16)

    # Small f32 params, every segment 128-lane aligned inside p.
    b1 = p_ref[:, 0:2 * H]          # (1, 512)
    b2 = p_ref[:, 2 * H:3 * H]      # (1, 256)
    c2 = p_ref[:, 3 * H:4 * H]      # (1, 256)
    w3 = p_ref[:, 4 * H:5 * H]      # (1, 256)
    v3 = p_ref[:, 5 * H:6 * H]      # (1, 256)

    hg = jnp.dot(x16, w1_ref[...], preferred_element_type=jnp.float32) + b1
    hg = jnp.maximum(hg, 0.0)                 # f32 activations stay f32 (VPU)

    h1 = hg[:, :H].astype(jnp.bfloat16)       # clean 256-lane split
    g1 = hg[:, H:].astype(jnp.bfloat16)

    # ---- Layer 2: row-stacked weight sliced at row 256 (bf16 tile boundary).
    w2 = w2v2_ref[:H, :]                      # (256, 256) bf16
    v2 = w2v2_ref[H:, :]                      # (256, 256) bf16
    h2 = jnp.maximum(
        jnp.dot(h1, w2, preferred_element_type=jnp.float32) + b2, 0.0)
    g2 = jnp.maximum(
        jnp.dot(g1, v2, preferred_element_type=jnp.float32) + c2, 0.0)

    # ---- Layer 3: N=1 heads as VPU multiply + XLU lane-reduce.
    q1 = jnp.sum(h2 * w3, axis=-1, keepdims=True)   # (B, 1)
    q2 = jnp.sum(g2 * v3, axis=-1, keepdims=True)   # (B, 1)

    # Single packed (B, 2) full-ref store: [q1 | q2] + [b3 | c3].
    q_ref[...] = jnp.concatenate([q1, q2], axis=1) + b3c3_ref[...]


def critic_forward(s, a, params):
    """s: (B, S) f32, a: (B, A) f32; returns (q1, q2), each (B, 1) f32."""
    s = s.astype(jnp.float32)
    a = a.astype(jnp.float32)
    B = s.shape[0]
    in_dim = params["w1"].shape[0]
    H = params["w2v2"].shape[1]

    args = (s, a, params["w1"], params["w2v2"], params["p"], params["b3c3"])

    # Full-array blocks (block shape == array dims) => no (8,128) tiling
    # constraint; everything (~0.3 MiB) trivially fits VMEM, so grid=() and no
    # vmem override are needed.
    full = lambda arr: pl.BlockSpec(arr.shape, lambda: (0,) * arr.ndim)

    flops = int(2 * B * (in_dim * 2 * H      # fused layer 1 (both heads)
                         + 2 * H * H         # layer 2, two heads
                         + 2 * H))           # layer 3, two heads
    bytes_accessed = int(sum(int(x.size) * x.dtype.itemsize for x in args)
                         + B * 2 * 4)

    qq = pl.pallas_call(
        critic_kernel,
        out_shape=jax.ShapeDtypeStruct((B, 2), jnp.float32),
        grid=(),
        in_specs=[full(x) for x in args],
        out_specs=pl.BlockSpec((B, 2), lambda: (0, 0)),
        cost_estimate=pl.CostEstimate(flops=flops, transcendentals=0,
                                      bytes_accessed=bytes_accessed),
    )(*args)

    return qq[:, 0:1], qq[:, 1:2]


def init_params(key, state_dim, action_dim, hidden=256):
    """Init matching the PyTorch module, packed into the kernel layout.

    PyTorch Linear stores weight as (out, in) and computes x @ W.T + b; we keep
    the transposed (in, out) matrices.  Weights ~ N(0, 0.1); biases use the
    default PyTorch uniform(-1/sqrt(fan_in), 1/sqrt(fan_in)) init.
    Packing:  w1 = [W1_q1 | W1_q2] (in_dim, 2H) bf16;
              w2v2 = [W2_q1 ; W2_q2] (2H, H) bf16;
              p = [b1_q1 | b1_q2 | b2 | c2 | w3 | v3] (1, 6H) f32;
              b3c3 = [b3 | c3] (1, 2) f32.
    """
    in_dim = state_dim + action_dim
    keys = jax.random.split(key, 12)

    def w(k, fi, fo):
        return 0.1 * jax.random.normal(k, (fi, fo), dtype=jnp.float32)

    def b(k, fi, fo):
        bound = 1.0 / np.sqrt(float(fi))
        return jax.random.uniform(k, (1, fo), minval=-bound, maxval=bound,
                                  dtype=jnp.float32)

    # Q1 head
    w1 = w(keys[0], in_dim, hidden); b1 = b(keys[1], in_dim, hidden)
    w2 = w(keys[2], hidden, hidden); b2 = b(keys[3], hidden, hidden)
    w3 = w(keys[4], hidden, 1);      b3 = b(keys[5], hidden, 1)
    # Q2 head
    v1 = w(keys[6], in_dim, hidden); c1 = b(keys[7], in_dim, hidden)
    v2 = w(keys[8], hidden, hidden); c2 = b(keys[9], hidden, hidden)
    v3 = w(keys[10], hidden, 1);     c3 = b(keys[11], hidden, 1)

    w1f = jnp.concatenate([w1, v1], axis=1).astype(jnp.bfloat16)    # (in_dim, 2H)
    w2v2 = jnp.concatenate([w2, v2], axis=0).astype(jnp.bfloat16)   # (2H, H)
    b1f = jnp.concatenate([b1, c1], axis=1)                         # (1, 2H)
    p = jnp.concatenate([b1f, b2, c2, w3.T, v3.T], axis=1)          # (1, 6H) f32
    b3c3 = jnp.concatenate([b3, c3], axis=1)                        # (1, 2)  f32

    return {"w1": w1f, "w2v2": w2v2, "p": p, "b3c3": b3c3}


if __name__ == "__main__":
    key = jax.random.PRNGKey(0)
    k_s, k_a, k_p = jax.random.split(key, 3)

    batch = 8
    state_dim = 24
    action_dim = 8
    hidden = 256

    s = jax.random.normal(k_s, (batch, state_dim), dtype=jnp.float32)
    a = jax.random.normal(k_a, (batch, action_dim), dtype=jnp.float32)
    params = init_params(k_p, state_dim, action_dim, hidden)

    q1, q2 = critic_forward(s, a, params)
    jax.block_until_ready((q1, q2))

    # Pure-JAX f32 reference using the same (bf16-quantized) weights.
    H = hidden
    w1f = params["w1"].astype(jnp.float32)
    w2 = params["w2v2"][:H].astype(jnp.float32)
    v2 = params["w2v2"][H:].astype(jnp.float32)
    p = params["p"]
    b1f, b2, c2 = p[:, :2 * H], p[:, 2 * H:3 * H], p[:, 3 * H:4 * H]
    w3, v3 = p[:, 4 * H:5 * H], p[:, 5 * H:6 * H]
    b3, c3 = params["b3c3"][:, 0:1], params["b3c3"][:, 1:2]

    x = jnp.concatenate([s, a], axis=1)
    hg = jnp.maximum(x @ w1f + b1f, 0.0)
    h1, g1 = hg[:, :H], hg[:, H:]
    h2 = jnp.maximum(h1 @ w2 + b2, 0.0)
    g2 = jnp.maximum(g1 @ v2 + c2, 0.0)
    r1 = jnp.sum(h2 * w3, axis=-1, keepdims=True) + b3
    r2 = jnp.sum(g2 * v3, axis=-1, keepdims=True) + c3

    assert q1.shape == (batch, 1) and q2.shape == (batch, 1)
    # Tolerance reflects bf16 rounding of dot operands inside the kernel
    # (weights stored bf16; activations cast at the dots), reference keeps f32.
    assert jnp.allclose(q1, r1, atol=2e-2, rtol=2e-2)
    assert jnp.allclose(q2, r2, atol=2e-2, rtol=2e-2)

    print("KERNEL_OK")
</pallas_src>

<mosaic_0001>
module attributes {stable_mosaic.version = 11 : i64} {
  func.func @critic_kernel(%arg0: memref<8x24xf32, #tpu.memory_space<vmem>>, %arg1: memref<8x8xf32, #tpu.memory_space<vmem>>, %arg2: memref<32x512xbf16, #tpu.memory_space<vmem>>, %arg3: memref<512x256xbf16, #tpu.memory_space<vmem>>, %arg4: memref<1x1536xf32, #tpu.memory_space<vmem>>, %arg5: memref<1x2xf32, #tpu.memory_space<vmem>>, %arg6: memref<8x2xf32, #tpu.memory_space<vmem>>) attributes {dimension_semantics = [], scalar_prefetch = 0 : i64, scratch_operands = 0 : i64, tpu.core_type = #tpu.core_type<tc>} {
    %c0 = arith.constant 0 : index
    %c0_0 = arith.constant 0 : index
    %0 = vector.load %arg0[%c0, %c0_0] : memref<8x24xf32, #tpu.memory_space<vmem>>, vector<8x24xf32>
    %c0_1 = arith.constant 0 : index
    %c0_2 = arith.constant 0 : index
    %1 = vector.load %arg1[%c0_1, %c0_2] : memref<8x8xf32, #tpu.memory_space<vmem>>, vector<8x8xf32>
    %2 = tpu.concatenate %0, %1 in 1 : vector<8x24xf32>, vector<8x8xf32> -> vector<8x32xf32>
    %3 = arith.truncf %2 : vector<8x32xf32> to vector<8x32xbf16>
    %c0_3 = arith.constant 0 : index
    %c0_4 = arith.constant 0 : index
    %4 = vector.load %arg4[%c0_3, %c0_4] : memref<1x1536xf32, #tpu.memory_space<vmem>>, vector<1x512xf32>
    %c0_5 = arith.constant 0 : index
    %c512 = arith.constant 512 : index
    %5 = vector.load %arg4[%c0_5, %c512] : memref<1x1536xf32, #tpu.memory_space<vmem>>, vector<1x256xf32>
    %c0_6 = arith.constant 0 : index
    %c768 = arith.constant 768 : index
    %6 = vector.load %arg4[%c0_6, %c768] : memref<1x1536xf32, #tpu.memory_space<vmem>>, vector<1x256xf32>
    %c0_7 = arith.constant 0 : index
    %c1024 = arith.constant 1024 : index
    %7 = vector.load %arg4[%c0_7, %c1024] : memref<1x1536xf32, #tpu.memory_space<vmem>>, vector<1x256xf32>
    %c0_8 = arith.constant 0 : index
    %c1280 = arith.constant 1280 : index
    %8 = vector.load %arg4[%c0_8, %c1280] : memref<1x1536xf32, #tpu.memory_space<vmem>>, vector<1x256xf32>
    %c0_9 = arith.constant 0 : index
    %c0_10 = arith.constant 0 : index
    %9 = vector.load %arg2[%c0_9, %c0_10] : memref<32x512xbf16, #tpu.memory_space<vmem>>, vector<32x512xbf16>
    %cst = arith.constant dense<0.000000e+00> : vector<8x512xf32>
    %10 = tpu.matmul %3, %9, %cst {dimension_numbers = #tpu.dot_dimension_numbers<[1], [0], [0], [1], [0, 0, 1, 1], [], []>} : vector<8x32xbf16>, vector<32x512xbf16>, vector<8x512xf32> -> vector<8x512xf32>
    %11 = vector.broadcast %4 : vector<1x512xf32> to vector<8x512xf32>
    %12 = arith.addf %10, %11 : vector<8x512xf32>
    %cst_11 = arith.constant 0.000000e+00 : f32
    %13 = vector.broadcast %cst_11 : f32 to vector<8x512xf32>
    %14 = arith.maximumf %12, %13 : vector<8x512xf32>
    %15 = vector.extract_strided_slice %14 {offsets = [0, 0], sizes = [8, 256], strides = [1, 1]} : vector<8x512xf32> to vector<8x256xf32>
    %16 = arith.truncf %15 : vector<8x256xf32> to vector<8x256xbf16>
    %17 = vector.extract_strided_slice %14 {offsets = [0, 256], sizes = [8, 256], strides = [1, 1]} : vector<8x512xf32> to vector<8x256xf32>
    %18 = arith.truncf %17 : vector<8x256xf32> to vector<8x256xbf16>
    %c0_12 = arith.constant 0 : index
    %c0_13 = arith.constant 0 : index
    %19 = vector.load %arg3[%c0_12, %c0_13] : memref<512x256xbf16, #tpu.memory_space<vmem>>, vector<256x256xbf16>
    %c256 = arith.constant 256 : index
    %c0_14 = arith.constant 0 : index
    %20 = vector.load %arg3[%c256, %c0_14] : memref<512x256xbf16, #tpu.memory_space<vmem>>, vector<256x256xbf16>
    %cst_15 = arith.constant dense<0.000000e+00> : vector<8x256xf32>
    %21 = tpu.matmul %16, %19, %cst_15 {dimension_numbers = #tpu.dot_dimension_numbers<[1], [0], [0], [1], [0, 0, 1, 1], [], []>} : vector<8x256xbf16>, vector<256x256xbf16>, vector<8x256xf32> -> vector<8x256xf32>
    %22 = vector.broadcast %5 : vector<1x256xf32> to vector<8x256xf32>
    %23 = arith.addf %21, %22 : vector<8x256xf32>
    %cst_16 = arith.constant 0.000000e+00 : f32
    %24 = vector.broadcast %cst_16 : f32 to vector<8x256xf32>
    %25 = arith.maximumf %23, %24 : vector<8x256xf32>
    %cst_17 = arith.constant dense<0.000000e+00> : vector<8x256xf32>
    %26 = tpu.matmul %18, %20, %cst_17 {dimension_numbers = #tpu.dot_dimension_numbers<[1], [0], [0], [1], [0, 0, 1, 1], [], []>} : vector<8x256xbf16>, vector<256x256xbf16>, vector<8x256xf32> -> vector<8x256xf32>
    %27 = vector.broadcast %6 : vector<1x256xf32> to vector<8x256xf32>
    %28 = arith.addf %26, %27 : vector<8x256xf32>
    %cst_18 = arith.constant 0.000000e+00 : f32
    %29 = vector.broadcast %cst_18 : f32 to vector<8x256xf32>
    %30 = arith.maximumf %28, %29 : vector<8x256xf32>
    %31 = vector.broadcast %7 : vector<1x256xf32> to vector<8x256xf32>
    %32 = arith.mulf %25, %31 : vector<8x256xf32>
    %cst_19 = arith.constant dense<0.000000e+00> : vector<8xf32>
    %33 = vector.multi_reduction <add>, %32, %cst_19 [1] : vector<8x256xf32> to vector<8xf32>
    %34 = vector.shape_cast %33 : vector<8xf32> to vector<8x1xf32>
    %35 = vector.broadcast %8 : vector<1x256xf32> to vector<8x256xf32>
    %36 = arith.mulf %30, %35 : vector<8x256xf32>
    %cst_20 = arith.constant dense<0.000000e+00> : vector<8xf32>
    %37 = vector.multi_reduction <add>, %36, %cst_20 [1] : vector<8x256xf32> to vector<8xf32>
    %38 = vector.shape_cast %37 : vector<8xf32> to vector<8x1xf32>
    %39 = tpu.concatenate %34, %38 in 1 : vector<8x1xf32>, vector<8x1xf32> -> vector<8x2xf32>
    %c0_21 = arith.constant 0 : index
    %c0_22 = arith.constant 0 : index
    %40 = vector.load %arg5[%c0_21, %c0_22] : memref<1x2xf32, #tpu.memory_space<vmem>>, vector<1x2xf32>
    %41 = vector.broadcast %40 : vector<1x2xf32> to vector<8x2xf32>
    %42 = arith.addf %39, %41 : vector<8x2xf32>
    %c0_23 = arith.constant 0 : index
    %c0_24 = arith.constant 0 : index
    %43 = vector.load %arg6[%c0_23, %c0_24] : memref<8x2xf32, #tpu.memory_space<vmem>>, vector<8x2xf32>
    tpu.vector_store %arg6[%c0_23, %c0_24], %42 {strides = array<i32>} : memref<8x2xf32, #tpu.memory_space<vmem>>, vector<8x2xf32>,
    return
  }
}

</mosaic_0001>

<llo_original>
// kernel: tpu_custom_call.1
$region0: #{tpu_custom_call.1}
  #allocation0 [shape = 'u32[]', space=smem, size = 0x4, offset = 0x4, fixed_abs, tag = 'smem constant byte address 0x4 - core index']
  #allocation1 [shape = 'u32[144,128]{1,0:T(1,128)}', space=vmem, size = 0x12000, scoped, tag = 'internal scratch']
  %s0 = inlined_call_operand.hbm [shape: f32[8,24], index: 0, kind: input, shape index: {}]
  %s1 = inlined_call_operand.hbm [shape: f32[8,8], index: 1, kind: input, shape index: {}]
  %s2 = inlined_call_operand.hbm [shape: bf16[32,512], index: 2, kind: input, shape index: {}]
  %s3 = inlined_call_operand.hbm [shape: bf16[512,256], index: 3, kind: input, shape index: {}]
  %s4 = inlined_call_operand.vmem [shape: f32[1,1536], index: 4, kind: input, shape index: {}]
  %s5 = inlined_call_operand.vmem [shape: f32[1,2], index: 5, kind: input, shape index: {}]
  %s6 = inlined_call_operand.vmem [shape: f32[8,2], index: 6, kind: output, shape index: {}]
  %s7 = sld [smem:[#allocation0]]
  $region50: #{tpu_custom_call.1} parent=0
    _
  %s9 = ssub.s32 1, %s7
  %s10 = scalar_select 0, %s9, %s7
  $region1: #{tpu_custom_call.1} parent=0
    #allocation2 [shape = 'u8[4096]{0}', space=vmem, size = 0x1000, scoped, tag = 'input window, operand 0, single buffered']
    #allocation3 [shape = 's32[1]{0}', space=sflag, size = 0x4, scoped, tag = 'scoped memory for tpu_custom_call.1']
    #allocation4 [shape = 'u8[4096]{0}', space=vmem, size = 0x1000, scoped, tag = 'input window, operand 1, single buffered']
    #allocation5 [shape = 's32[1]{0}', space=sflag, size = 0x4, scoped, tag = 'scoped memory for tpu_custom_call.1']
    #allocation6 [shape = 'u8[32768]{0}', space=vmem, size = 0x8000, scoped, tag = 'input window, operand 2, single buffered']
    #allocation7 [shape = 'u8[262144]{0}', space=vmem, size = 0x40000, scoped, tag = 'input window, operand 3, single buffered']
    #allocation8 [shape = 's32[1]{0}', space=sflag, size = 0x4, scoped, tag = 'scoped memory for tpu_custom_call.1']
    %11 = vsyncpa [#allocation3], 0
    %12 = vsyncpa [#allocation5], 0
    %13 = vsyncpa [#allocation8], 0
    // Predicated region
    $region2: #{tpu_custom_call.1} parent=1 // pred_check
      _
    $region3: #{tpu_custom_call.1} parent=1 // pred_check_branch
      %15 = sbr.rel (0) target = $region5
    $region4: #{tpu_custom_call.1} parent=1 // pred_region
      %s17 = ssub.s32 128, 128
      %18 = vsyncadd [#allocation3], %s17
      %s20 = sshll.u32 [#allocation2], 4
      %s21 = int_to_ptr.vmem [resolvable:$true] %s20
      %23 = dma.hbm_to_vmem [thread:$0]  %s0, 128, %s21, [#allocation3]
    $region5: #{tpu_custom_call.1} parent=1 // pred_fallthru
      _
    // Predicated region
    $region6: #{tpu_custom_call.1} parent=1 // pred_check
      _
    $region7: #{tpu_custom_call.1} parent=1 // pred_check_branch
      %25 = sbr.rel (0) target = $region9
    $region8: #{tpu_custom_call.1} parent=1 // pred_region
      %s27 = ssub.s32 128, 128
      %28 = vsyncadd [#allocation5], %s27
      %s30 = sshll.u32 [#allocation4], 4
      %s31 = int_to_ptr.vmem [resolvable:$true] %s30
      %33 = dma.hbm_to_vmem [thread:$0]  %s1, 128, %s31, [#allocation5]
    $region9: #{tpu_custom_call.1} parent=1 // pred_fallthru
      _
    // Predicated region
    $region10: #{tpu_custom_call.1} parent=1 // pred_check
      _
    $region11: #{tpu_custom_call.1} parent=1 // pred_check_branch
      %35 = sbr.rel (0) target = $region13
    $region12: #{tpu_custom_call.1} parent=1 // pred_region
      %s37 = ssub.s32 1024, 1024
      %38 = vsyncadd [#allocation5], %s37
      %s39 = sshll.u32 [#allocation6], 4
      %s40 = int_to_ptr.vmem [resolvable:$true] %s39
      %45 = dma.hbm_to_vmem [thread:$0]  %s2, 1024, %s40, [#allocation5], 256, 256, 16
    $region13: #{tpu_custom_call.1} parent=1 // pred_fallthru
      _
    // Predicated region
    $region14: #{tpu_custom_call.1} parent=1 // pred_check
      _
    $region15: #{tpu_custom_call.1} parent=1 // pred_check_branch
      %47 = sbr.rel (0) target = $region17
    $region16: #{tpu_custom_call.1} parent=1 // pred_region
      %s49 = ssub.s32 8192, 8192
      %50 = vsyncadd [#allocation8], %s49
      %s51 = sshll.u32 [#allocation7], 4
      %s52 = int_to_ptr.vmem [resolvable:$true] %s51
      %57 = dma.hbm_to_vmem [thread:$0]  %s3, 8192, %s52, [#allocation8], 128, 128, 8
    $region17: #{tpu_custom_call.1} parent=1 // pred_fallthru
      _
    // Predicated region
    $region18: #{tpu_custom_call.1} parent=1 // pred_check
      _
    $region19: #{tpu_custom_call.1} parent=1 // pred_check_branch
      %59 = sbr.rel (0) target = $region21
    $region20: #{tpu_custom_call.1} parent=1 // pred_region
      _
    $region21: #{tpu_custom_call.1} parent=1 // pred_fallthru
      _
    // Predicated region
    $region22: #{tpu_custom_call.1} parent=1 // pred_check
      _
    $region23: #{tpu_custom_call.1} parent=1 // pred_check_branch
      %61 = sbr.rel (0) target = $region25
    $region24: #{tpu_custom_call.1} parent=1 // pred_region
      _
    $region25: #{tpu_custom_call.1} parent=1 // pred_fallthru
      _
    // Predicated region
    $region26: #{tpu_custom_call.1} parent=1 // pred_check
      _
    $region27: #{tpu_custom_call.1} parent=1 // pred_check_branch
      %63 = sbr.rel (0) target = $region29
    $region28: #{tpu_custom_call.1} parent=1 // pred_region
      %64 = dma.done [#allocation3], 128
    $region29: #{tpu_custom_call.1} parent=1 // pred_fallthru
      _
    // Predicated region
    $region30: #{tpu_custom_call.1} parent=1 // pred_check
      _
    $region31: #{tpu_custom_call.1} parent=1 // pred_check_branch
      %66 = sbr.rel (0) target = $region33
    $region32: #{tpu_custom_call.1} parent=1 // pred_region
      %67 = dma.done [#allocation5], 128
    $region33: #{tpu_custom_call.1} parent=1 // pred_fallthru
      _
    // Predicated region
    $region34: #{tpu_custom_call.1} parent=1 // pred_check
      _
    $region35: #{tpu_custom_call.1} parent=1 // pred_check_branch
      %69 = sbr.rel (0) target = $region37
    $region36: #{tpu_custom_call.1} parent=1 // pred_region
      %70 = dma.done [#allocation5], 1024
    $region37: #{tpu_custom_call.1} parent=1 // pred_fallthru
      _
    // Predicated region
    $region38: #{tpu_custom_call.1} parent=1 // pred_check
      _
    $region39: #{tpu_custom_call.1} parent=1 // pred_check_branch
      %72 = sbr.rel (0) target = $region41
    $region40: #{tpu_custom_call.1} parent=1 // pred_region
      %73 = dma.done [#allocation8], 8192
    $region41: #{tpu_custom_call.1} parent=1 // pred_fallthru
      _
    %v75 = vld [vmem:[#allocation2] sm:$0xff]
    %v76 = vld [vmem:[#allocation4] sm:$0xff]
    %78 = vrot.lane.b32.xlu0 %v76, 24
    %v79 = vpop.permute.xlu0 %78
    %vm81 = vcmask 195584
    %v82 = vsel %vm81, %v75, %v79
    %v83 = vpack.c.bf16 %v82, %v82
    %v84 = vld [vmem:[%s4] sm:$0xf]
    %v85 = vld [vmem:[%s4 + $0x4] sm:$0x3]
    %v86 = vld [vmem:[%s4 + $0x6] sm:$0x3]
    %v87 = vld [vmem:[%s4 + $0x8] sm:$0x3]
    %v88 = vld [vmem:[%s4 + $0xa] sm:$0x3]
    %v89 = vld [vmem:[#allocation6] sm:$0xff]
    %v90 = vld [vmem:[#allocation6 + $0x8] sm:$0xff]
    %v91 = vld [vmem:[#allocation6 + $0x10] sm:$0xff]
    %v92 = vld [vmem:[#allocation6 + $0x18] sm:$0xff]
    %v93 = vld [vmem:[#allocation6 + $0x20] sm:$0xff]
    %v94 = vld [vmem:[#allocation6 + $0x28] sm:$0xff]
    %v95 = vld [vmem:[#allocation6 + $0x30] sm:$0xff]
    %v96 = vld [vmem:[#allocation6 + $0x38] sm:$0xff]
    %v98 = vlaneseq
    %v99 = vshrl.u32 %v98, 7
    %v100 = vsub.s32 0, %v99
    %v101 = vrot.slane %v84, %v100
    %v102 = vlaneseq
    %v103 = vshrl.u32 %v102, 7
    %v104 = vsub.s32 1, %v103
    %v105 = vrot.slane %v84, %v104
    %v106 = vlaneseq
    %v107 = vshrl.u32 %v106, 7
    %v108 = vsub.s32 2, %v107
    %v109 = vrot.slane %v84, %v108
    %v110 = vlaneseq
    %v111 = vshrl.u32 %v110, 7
    %v112 = vsub.s32 3, %v111
    %v113 = vrot.slane %v84, %v112
    %v126 = vunpack.c.l.b16 %v89
    %v127 = vunpack.c.h.b16 %v89
    %v128 = vunpack.c.l.b16 %v90
    %v129 = vunpack.c.h.b16 %v90
    %v130 = vunpack.c.l.b16 %v91
    %v131 = vunpack.c.h.b16 %v91
    %v132 = vunpack.c.l.b16 %v92
    %v133 = vunpack.c.h.b16 %v92
    %v134 = vunpack.c.l.b16 %v93
    %v135 = vunpack.c.h.b16 %v93
    %v136 = vunpack.c.l.b16 %v94
    %v137 = vunpack.c.h.b16 %v94
    %v138 = vunpack.c.l.b16 %v95
    %v139 = vunpack.c.h.b16 %v95
    %v140 = vunpack.c.l.b16 %v96
    %v141 = vunpack.c.h.b16 %v96
    %v142 = vpack.c.b16 %v130, %v126
    %v143 = vpack.c.b16 %v131, %v127
    %v144 = vpack.c.b16 %v132, %v128
    %v145 = vpack.c.b16 %v133, %v129
    %v146 = vpack.c.b16 %v138, %v134
    %v147 = vpack.c.b16 %v139, %v135
    %v148 = vpack.c.b16 %v140, %v136
    %v149 = vpack.c.b16 %v141, %v137
    %vm158 = vcmask 261120
    %v160 = vsel %vm158, %v83, 0
    %162 = vmatprep.subr.bf16.mxu0 %v143
    %163 = vmatpush1.bf16.msra.mxu0 %v142
    %164 = vmatprep.subr.bf16.mxu0 %v147
    %165 = vmatpush1.bf16.msra.mxu0 %v146
    %166 = vmatprep.subr.bf16.mxu0 0
    %167 = vmatpush1.bf16.msra.mxu0 0
    %168 = vmatprep.subr.bf16.mxu0 0
    %169 = vmatpush1.bf16.msra.mxu0 0
    %170 = vmatprep.subr.bf16.mxu0 0
    %171 = vmatpush1.bf16.msra.mxu0 0
    %172 = vmatprep.subr.bf16.mxu0 0
    %173 = vmatpush1.bf16.msra.mxu0 0
    %174 = vmatprep.subr.bf16.mxu0 0
    %175 = vmatpush1.bf16.msra.mxu0 0
    %176 = vmatprep.subr.bf16.mxu0 0
    %177 = vmatpush1.bf16.msra.mxu0 0
    %178 = vmatprep.subr.bf16.mxu0 0
    %179 = vmatpush1.bf16.msra.mxu0 0
    %180 = vmatprep.subr.bf16.mxu0 0
    %181 = vmatpush1.bf16.msra.mxu0 0
    %182 = vmatprep.subr.bf16.mxu0 0
    %183 = vmatpush1.bf16.msra.mxu0 0
    %184 = vmatprep.subr.bf16.mxu0 0
    %185 = vmatpush1.bf16.msra.mxu0 0
    %186 = vmatprep.subr.bf16.mxu0 0
    %187 = vmatpush1.bf16.msra.mxu0 0
    %188 = vmatprep.subr.bf16.mxu0 0
    %189 = vmatpush1.bf16.msra.mxu0 0
    %190 = vmatprep.subr.bf16.mxu0 0
    %191 = vmatpush1.bf16.msra.mxu0 0
    %192 = vmatprep.subr.bf16.mxu0 0
    %193 = vmatpush1.bf16.msra.mxu0 0
    %194 = vmatprep.mubr.bf16.mxu0 0
    %195 = vmatmul.mubr.bf16.gmra.mrb[0].mxu0 %v160
    %v196 = vpop.f32.mrb[0].mxu0
    %v197 = vadd.f32 %v101, %v196
    %v198 = vpop.f32.mrb[0].mxu0
    %v199 = vadd.f32 %v105, %v198
    %v200 = vpop.f32.mrb[0].mxu0
    %v201 = vpop.f32.mrb[0].mxu0
    %202 = vdwg.mxu0
    %203 = vmatprep.subr.bf16.mxu0 %v145
    %204 = vmatpush1.bf16.msra.mxu0 %v144
    %205 = vmatprep.subr.bf16.mxu0 %v149
    %206 = vmatpush1.bf16.msra.mxu0 %v148
    %207 = vmatprep.subr.bf16.mxu0 0
    %208 = vmatpush1.bf16.msra.mxu0 0
    %209 = vmatprep.subr.bf16.mxu0 0
    %210 = vmatpush1.bf16.msra.mxu0 0
    %211 = vmatprep.subr.bf16.mxu0 0
    %212 = vmatpush1.bf16.msra.mxu0 0
    %213 = vmatprep.subr.bf16.mxu0 0
    %214 = vmatpush1.bf16.msra.mxu0 0
    %215 = vmatprep.subr.bf16.mxu0 0
    %216 = vmatpush1.bf16.msra.mxu0 0
    %217 = vmatprep.subr.bf16.mxu0 0
    %218 = vmatpush1.bf16.msra.mxu0 0
    %219 = vmatprep.subr.bf16.mxu0 0
    %220 = vmatpush1.bf16.msra.mxu0 0
    %221 = vmatprep.subr.bf16.mxu0 0
    %222 = vmatpush1.bf16.msra.mxu0 0
    %223 = vmatprep.subr.bf16.mxu0 0
    %224 = vmatpush1.bf16.msra.mxu0 0
    %225 = vmatprep.subr.bf16.mxu0 0
    %226 = vmatpush1.bf16.msra.mxu0 0
    %227 = vmatprep.subr.bf16.mxu0 0
    %228 = vmatpush1.bf16.msra.mxu0 0
    %229 = vmatprep.subr.bf16.mxu0 0
    %230 = vmatpush1.bf16.msra.mxu0 0
    %231 = vmatprep.subr.bf16.mxu0 0
    %232 = vmatpush1.bf16.msra.mxu0 0
    %233 = vmatprep.subr.bf16.mxu0 0
    %234 = vmatpush1.bf16.msra.mxu0 0
    %235 = vmatprep.mubr.bf16.mxu0 0
    %236 = vmatmul.mubr.bf16.gmra.mrb[0].mxu0 %v160
    %v237 = vpop.f32.mrb[0].mxu0
    %v238 = vadd.f32 %v109, %v237
    %v239 = vpop.f32.mrb[0].mxu0
    %v240 = vadd.f32 %v113, %v239
    %v241 = vpop.f32.mrb[0].mxu0
    %v242 = vpop.f32.mrb[0].mxu0
    %243 = vdwg.mxu0
    %v244 = vmax.f32 %v197, 0.0
    %v245 = vmax.f32 %v199, 0.0
    %v246 = vmax.f32 %v238, 0.0
    %v247 = vmax.f32 %v240, 0.0
    %v248 = vpack.c.bf16 %v244, %v244
    %v249 = vpack.c.bf16 %v245, %v245
    %v250 = vpack.c.bf16 %v246, %v246
    %v251 = vpack.c.bf16 %v247, %v247
    %v252 = vld [vmem:[#allocation7] sm:$0xff]
    %v253 = vld [vmem:[#allocation7 + $0x8] sm:$0xff]
    %v254 = vld [vmem:[#allocation7 + $0x10] sm:$0xff]
    %v255 = vld [vmem:[#allocation7 + $0x18] sm:$0xff]
    %v256 = vld [vmem:[#allocation7 + $0x20] sm:$0xff]
    %v257 = vld [vmem:[#allocation7 + $0x28] sm:$0xff]
    %v258 = vld [vmem:[#allocation7 + $0x30] sm:$0xff]
    %v259 = vld [vmem:[#allocation7 + $0x38] sm:$0xff]
    %v260 = vld [vmem:[#allocation7 + $0x40] sm:$0xff]
    %v261 = vld [vmem:[#allocation7 + $0x48] sm:$0xff]
    %v262 = vld [vmem:[#allocation7 + $0x50] sm:$0xff]
    %v263 = vld [vmem:[#allocation7 + $0x58] sm:$0xff]
    %v264 = vld [vmem:[#allocation7 + $0x60] sm:$0xff]
    %v265 = vld [vmem:[#allocation7 + $0x68] sm:$0xff]
    %v266 = vld [vmem:[#allocation7 + $0x70] sm:$0xff]
    %v267 = vld [vmem:[#allocation7 + $0x78] sm:$0xff]
    %v268 = vld [vmem:[#allocation7 + $0x80] sm:$0xff]
    %v269 = vld [vmem:[#allocation7 + $0x88] sm:$0xff]
    %v270 = vld [vmem:[#allocation7 + $0x90] sm:$0xff]
    %v271 = vld [vmem:[#allocation7 + $0x98] sm:$0xff]
    %v272 = vld [vmem:[#allocation7 + $0xa0] sm:$0xff]
    %v273 = vld [vmem:[#allocation7 + $0xa8] sm:$0xff]
    %v274 = vld [vmem:[#allocation7 + $0xb0] sm:$0xff]
    %v275 = vld [vmem:[#allocation7 + $0xb8] sm:$0xff]
    %v276 = vld [vmem:[#allocation7 + $0xc0] sm:$0xff]
    %v277 = vld [vmem:[#allocation7 + $0xc8] sm:$0xff]
    %v278 = vld [vmem:[#allocation7 + $0xd0] sm:$0xff]
    %v279 = vld [vmem:[#allocation7 + $0xd8] sm:$0xff]
    %v280 = vld [vmem:[#allocation7 + $0xe0] sm:$0xff]
    %v281 = vld [vmem:[#allocation7 + $0xe8] sm:$0xff]
    %v282 = vld [vmem:[#allocation7 + $0xf0] sm:$0xff]
    %v283 = vld [vmem:[#allocation7 + $0xf8] sm:$0xff]
    %v284 = vld [vmem:[#allocation7 + $0x100] sm:$0xff]
    %v285 = vld [vmem:[#allocation7 + $0x108] sm:$0xff]
    %v286 = vld [vmem:[#allocation7 + $0x110] sm:$0xff]
    %v287 = vld [vmem:[#allocation7 + $0x118] sm:$0xff]
    %v288 = vld [vmem:[#allocation7 + $0x120] sm:$0xff]
    %v289 = vld [vmem:[#allocation7 + $0x128] sm:$0xff]
    %v290 = vld [vmem:[#allocation7 + $0x130] sm:$0xff]
    %v291 = vld [vmem:[#allocation7 + $0x138] sm:$0xff]
    %v292 = vld [vmem:[#allocation7 + $0x140] sm:$0xff]
    %v293 = vld [vmem:[#allocation7 + $0x148] sm:$0xff]
    %v294 = vld [vmem:[#allocation7 + $0x150] sm:$0xff]
    %v295 = vld [vmem:[#allocation7 + $0x158] sm:$0xff]
    %v296 = vld [vmem:[#allocation7 + $0x160] sm:$0xff]
    %v297 = vld [vmem:[#allocation7 + $0x168] sm:$0xff]
    %v298 = vld [vmem:[#allocation7 + $0x170] sm:$0xff]
    %v299 = vld [vmem:[#allocation7 + $0x178] sm:$0xff]
    %v300 = vld [vmem:[#allocation7 + $0x180] sm:$0xff]
    %v301 = vld [vmem:[#allocation7 + $0x188] sm:$0xff]
    %v302 = vld [vmem:[#allocation7 + $0x190] sm:$0xff]
    %v303 = vld [vmem:[#allocation7 + $0x198] sm:$0xff]
    %v304 = vld [vmem:[#allocation7 + $0x1a0] sm:$0xff]
    %v305 = vld [vmem:[#allocation7 + $0x1a8] sm:$0xff]
    %v306 = vld [vmem:[#allocation7 + $0x1b0] sm:$0xff]
    %v307 = vld [vmem:[#allocation7 + $0x1b8] sm:$0xff]
    %v308 = vld [vmem:[#allocation7 + $0x1c0] sm:$0xff]
    %v309 = vld [vmem:[#allocation7 + $0x1c8] sm:$0xff]
    %v310 = vld [vmem:[#allocation7 + $0x1d0] sm:$0xff]
    %v311 = vld [vmem:[#allocation7 + $0x1d8] sm:$0xff]
    %v312 = vld [vmem:[#allocation7 + $0x1e0] sm:$0xff]
    %v313 = vld [vmem:[#allocation7 + $0x1e8] sm:$0xff]
    %v314 = vld [vmem:[#allocation7 + $0x1f0] sm:$0xff]
    %v315 = vld [vmem:[#allocation7 + $0x1f8] sm:$0xff]
    %v317 = vlaneseq
    %v318 = vshrl.u32 %v317, 7
    %v319 = vsub.s32 0, %v318
    %v320 = vrot.slane %v85, %v319
    %v321 = vlaneseq
    %v322 = vshrl.u32 %v321, 7
    %v323 = vsub.s32 1, %v322
    %v324 = vrot.slane %v85, %v323
    %v359 = vunpack.c.l.b16 %v252
    %v360 = vunpack.c.h.b16 %v252
    %v361 = vunpack.c.l.b16 %v253
    %v362 = vunpack.c.h.b16 %v253
    %v363 = vunpack.c.l.b16 %v254
    %v364 = vunpack.c.h.b16 %v254
    %v365 = vunpack.c.l.b16 %v255
    %v366 = vunpack.c.h.b16 %v255
    %v367 = vunpack.c.l.b16 %v256
    %v368 = vunpack.c.h.b16 %v256
    %v369 = vunpack.c.l.b16 %v257
    %v370 = vunpack.c.h.b16 %v257
    %v371 = vunpack.c.l.b16 %v258
    %v372 = vunpack.c.h.b16 %v258
    %v373 = vunpack.c.l.b16 %v259
    %v374 = vunpack.c.h.b16 %v259
    %v375 = vunpack.c.l.b16 %v260
    %v376 = vunpack.c.h.b16 %v260
    %v377 = vunpack.c.l.b16 %v261
    %v378 = vunpack.c.h.b16 %v261
    %v379 = vunpack.c.l.b16 %v262
    %v380 = vunpack.c.h.b16 %v262
    %v381 = vunpack.c.l.b16 %v263
    %v382 = vunpack.c.h.b16 %v263
    %v383 = vunpack.c.l.b16 %v264
    %v384 = vunpack.c.h.b16 %v264
    %v385 = vunpack.c.l.b16 %v265
    %v386 = vunpack.c.h.b16 %v265
    %v387 = vunpack.c.l.b16 %v266
    %v388 = vunpack.c.h.b16 %v266
    %v389 = vunpack.c.l.b16 %v267
    %v390 = vunpack.c.h.b16 %v267
    %v391 = vunpack.c.l.b16 %v268
    %v392 = vunpack.c.h.b16 %v268
    %v393 = vunpack.c.l.b16 %v269
    %v394 = vunpack.c.h.b16 %v269
    %v395 = vunpack.c.l.b16 %v270
    %v396 = vunpack.c.h.b16 %v270
    %v397 = vunpack.c.l.b16 %v271
    %v398 = vunpack.c.h.b16 %v271
    %v399 = vunpack.c.l.b16 %v272
    %v400 = vunpack.c.h.b16 %v272
    %v401 = vunpack.c.l.b16 %v273
    %v402 = vunpack.c.h.b16 %v273
    %v403 = vunpack.c.l.b16 %v274
    %v404 = vunpack.c.h.b16 %v274
    %v405 = vunpack.c.l.b16 %v275
    %v406 = vunpack.c.h.b16 %v275
    %v407 = vunpack.c.l.b16 %v276
    %v408 = vunpack.c.h.b16 %v276
    %v409 = vunpack.c.l.b16 %v277
    %v410 = vunpack.c.h.b16 %v277
    %v411 = vunpack.c.l.b16 %v278
    %v412 = vunpack.c.h.b16 %v278
    %v413 = vunpack.c.l.b16 %v279
    %v414 = vunpack.c.h.b16 %v279
    %v415 = vunpack.c.l.b16 %v280
    %v416 = vunpack.c.h.b16 %v280
    %v417 = vunpack.c.l.b16 %v281
    %v418 = vunpack.c.h.b16 %v281
    %v419 = vunpack.c.l.b16 %v282
    %v420 = vunpack.c.h.b16 %v282
    %v421 = vunpack.c.l.b16 %v283
    %v422 = vunpack.c.h.b16 %v283
    %v423 = vpack.c.b16 %v361, %v359
    %v424 = vpack.c.b16 %v362, %v360
    %v425 = vpack.c.b16 %v365, %v363
    %v426 = vpack.c.b16 %v366, %v364
    %v427 = vpack.c.b16 %v369, %v367
    %v428 = vpack.c.b16 %v370, %v368
    %v429 = vpack.c.b16 %v373, %v371
    %v430 = vpack.c.b16 %v374, %v372
    %v431 = vpack.c.b16 %v377, %v375
    %v432 = vpack.c.b16 %v378, %v376
    %v433 = vpack.c.b16 %v381, %v379
    %v434 = vpack.c.b16 %v382, %v380
    %v435 = vpack.c.b16 %v385, %v383
    %v436 = vpack.c.b16 %v386, %v384
    %v437 = vpack.c.b16 %v389, %v387
    %v438 = vpack.c.b16 %v390, %v388
    %v439 = vpack.c.b16 %v393, %v391
    %v440 = vpack.c.b16 %v394, %v392
    %v441 = vpack.c.b16 %v397, %v395
    %v442 = vpack.c.b16 %v398, %v396
    %v443 = vpack.c.b16 %v401, %v399
    %v444 = vpack.c.b16 %v402, %v400
    %v445 = vpack.c.b16 %v405, %v403
    %v446 = vpack.c.b16 %v406, %v404
    %v447 = vpack.c.b16 %v409, %v407
    %v448 = vpack.c.b16 %v410, %v408
    %v449 = vpack.c.b16 %v413, %v411
    %v450 = vpack.c.b16 %v414, %v412
    %v451 = vpack.c.b16 %v417, %v415
    %v452 = vpack.c.b16 %v418, %v416
    %v453 = vpack.c.b16 %v421, %v419
    %v454 = vpack.c.b16 %v422, %v420
    %487 = vmatprep.subr.bf16.mxu0 %v424
    %488 = vmatpush1.bf16.msra.mxu0 %v423
    %489 = vmatprep.subr.bf16.mxu0 %v426
    %490 = vmatpush1.bf16.msra.mxu0 %v425
    %491 = vmatprep.subr.bf16.mxu0 %v428
    %492 = vmatpush1.bf16.msra.mxu0 %v427
    %493 = vmatprep.subr.bf16.mxu0 %v430
    %494 = vmatpush1.bf16.msra.mxu0 %v429
    %495 = vmatprep.subr.bf16.mxu0 %v432
    %496 = vmatpush1.bf16.msra.mxu0 %v431
    %497 = vmatprep.subr.bf16.mxu0 %v434
    %498 = vmatpush1.bf16.msra.mxu0 %v433
    %499 = vmatprep.subr.bf16.mxu0 %v436
    %500 = vmatpush1.bf16.msra.mxu0 %v435
    %501 = vmatprep.subr.bf16.mxu0 %v438
    %502 = vmatpush1.bf16.msra.mxu0 %v437
    %503 = vmatprep.subr.bf16.mxu0 %v440
    %504 = vmatpush1.bf16.msra.mxu0 %v439
    %505 = vmatprep.subr.bf16.mxu0 %v442
    %506 = vmatpush1.bf16.msra.mxu0 %v441
    %507 = vmatprep.subr.bf16.mxu0 %v444
    %508 = vmatpush1.bf16.msra.mxu0 %v443
    %509 = vmatprep.subr.bf16.mxu0 %v446
    %510 = vmatpush1.bf16.msra.mxu0 %v445
    %511 = vmatprep.subr.bf16.mxu0 %v448
    %512 = vmatpush1.bf16.msra.mxu0 %v447
    %513 = vmatprep.subr.bf16.mxu0 %v450
    %514 = vmatpush1.bf16.msra.mxu0 %v449
    %515 = vmatprep.subr.bf16.mxu0 %v452
    %516 = vmatpush1.bf16.msra.mxu0 %v451
    %517 = vmatprep.subr.bf16.mxu0 %v454
    %518 = vmatpush1.bf16.msra.mxu0 %v453
    %519 = vmatprep.mubr.bf16.mxu0 %v249
    %520 = vmatmul.mubr.bf16.gmra.mrb[0].mxu0 %v248
    %v521 = vpop.f32.mrb[0].mxu0
    %v522 = vadd.f32 %v320, %v521
    %v523 = vpop.f32.mrb[0].mxu0
    %v524 = vadd.f32 %v324, %v523
    %v525 = vpop.f32.mrb[0].mxu0
    %v526 = vpop.f32.mrb[0].mxu0
    %527 = vdwg.mxu0
    %v528 = vmax.f32 %v522, 0.0
    %v529 = vmax.f32 %v524, 0.0
    %v531 = vlaneseq
    %v532 = vshrl.u32 %v531, 7
    %v533 = vsub.s32 0, %v532
    %v534 = vrot.slane %v86, %v533
    %v535 = vlaneseq
    %v536 = vshrl.u32 %v535, 7
    %v537 = vsub.s32 1, %v536
    %v538 = vrot.slane %v86, %v537
    %v573 = vunpack.c.l.b16 %v284
    %v574 = vunpack.c.h.b16 %v284
    %v575 = vunpack.c.l.b16 %v285
    %v576 = vunpack.c.h.b16 %v285
    %v577 = vunpack.c.l.b16 %v286
    %v578 = vunpack.c.h.b16 %v286
    %v579 = vunpack.c.l.b16 %v287
    %v580 = vunpack.c.h.b16 %v287
    %v581 = vunpack.c.l.b16 %v288
    %v582 = vunpack.c.h.b16 %v288
    %v583 = vunpack.c.l.b16 %v289
    %v584 = vunpack.c.h.b16 %v289
    %v585 = vunpack.c.l.b16 %v290
    %v586 = vunpack.c.h.b16 %v290
    %v587 = vunpack.c.l.b16 %v291
    %v588 = vunpack.c.h.b16 %v291
    %v589 = vunpack.c.l.b16 %v292
    %v590 = vunpack.c.h.b16 %v292
    %v591 = vunpack.c.l.b16 %v293
    %v592 = vunpack.c.h.b16 %v293
    %v593 = vunpack.c.l.b16 %v294
    %v594 = vunpack.c.h.b16 %v294
    %v595 = vunpack.c.l.b16 %v295
    %v596 = vunpack.c.h.b16 %v295
    %v597 = vunpack.c.l.b16 %v296
    %v598 = vunpack.c.h.b16 %v296
    %v599 = vunpack.c.l.b16 %v297
    %v600 = vunpack.c.h.b16 %v297
    %v601 = vunpack.c.l.b16 %v298
    %v602 = vunpack.c.h.b16 %v298
    %v603 = vunpack.c.l.b16 %v299
    %v604 = vunpack.c.h.b16 %v299
    %v605 = vunpack.c.l.b16 %v300
    %v606 = vunpack.c.h.b16 %v300
    %v607 = vunpack.c.l.b16 %v301
    %v608 = vunpack.c.h.b16 %v301
    %v609 = vunpack.c.l.b16 %v302
    %v610 = vunpack.c.h.b16 %v302
    %v611 = vunpack.c.l.b16 %v303
    %v612 = vunpack.c.h.b16 %v303
    %v613 = vunpack.c.l.b16 %v304
    %v614 = vunpack.c.h.b16 %v304
    %v615 = vunpack.c.l.b16 %v305
    %v616 = vunpack.c.h.b16 %v305
    %v617 = vunpack.c.l.b16 %v306
    %v618 = vunpack.c.h.b16 %v306
    %v619 = vunpack.c.l.b16 %v307
    %v620 = vunpack.c.h.b16 %v307
    %v621 = vunpack.c.l.b16 %v308
    %v622 = vunpack.c.h.b16 %v308
    %v623 = vunpack.c.l.b16 %v309
    %v624 = vunpack.c.h.b16 %v309
    %v625 = vunpack.c.l.b16 %v310
    %v626 = vunpack.c.h.b16 %v310
    %v627 = vunpack.c.l.b16 %v311
    %v628 = vunpack.c.h.b16 %v311
    %v629 = vunpack.c.l.b16 %v312
    %v630 = vunpack.c.h.b16 %v312
    %v631 = vunpack.c.l.b16 %v313
    %v632 = vunpack.c.h.b16 %v313
    %v633 = vunpack.c.l.b16 %v314
    %v634 = vunpack.c.h.b16 %v314
    %v635 = vunpack.c.l.b16 %v315
    %v636 = vunpack.c.h.b16 %v315
    %v637 = vpack.c.b16 %v575, %v573
    %v638 = vpack.c.b16 %v576, %v574
    %v639 = vpack.c.b16 %v579, %v577
    %v640 = vpack.c.b16 %v580, %v578
    %v641 = vpack.c.b16 %v583, %v581
    %v642 = vpack.c.b16 %v584, %v582
    %v643 = vpack.c.b16 %v587, %v585
    %v644 = vpack.c.b16 %v588, %v586
    %v645 = vpack.c.b16 %v591, %v589
    %v646 = vpack.c.b16 %v592, %v590
    %v647 = vpack.c.b16 %v595, %v593
    %v648 = vpack.c.b16 %v596, %v594
    %v649 = vpack.c.b16 %v599, %v597
    %v650 = vpack.c.b16 %v600, %v598
    %v651 = vpack.c.b16 %v603, %v601
    %v652 = vpack.c.b16 %v604, %v602
    %v653 = vpack.c.b16 %v607, %v605
    %v654 = vpack.c.b16 %v608, %v606
    %v655 = vpack.c.b16 %v611, %v609
    %v656 = vpack.c.b16 %v612, %v610
    %v657 = vpack.c.b16 %v615, %v613
    %v658 = vpack.c.b16 %v616, %v614
    %v659 = vpack.c.b16 %v619, %v617
    %v660 = vpack.c.b16 %v620, %v618
    %v661 = vpack.c.b16 %v623, %v621
    %v662 = vpack.c.b16 %v624, %v622
    %v663 = vpack.c.b16 %v627, %v625
    %v664 = vpack.c.b16 %v628, %v626
    %v665 = vpack.c.b16 %v631, %v629
    %v666 = vpack.c.b16 %v632, %v630
    %v667 = vpack.c.b16 %v635, %v633
    %v668 = vpack.c.b16 %v636, %v634
    %701 = vmatprep.subr.bf16.mxu0 %v638
    %702 = vmatpush1.bf16.msra.mxu0 %v637
    %703 = vmatprep.subr.bf16.mxu0 %v640
    %704 = vmatpush1.bf16.msra.mxu0 %v639
    %705 = vmatprep.subr.bf16.mxu0 %v642
    %706 = vmatpush1.bf16.msra.mxu0 %v641
    %707 = vmatprep.subr.bf16.mxu0 %v644
    %708 = vmatpush1.bf16.msra.mxu0 %v643
    %709 = vmatprep.subr.bf16.mxu0 %v646
    %710 = vmatpush1.bf16.msra.mxu0 %v645
    %711 = vmatprep.subr.bf16.mxu0 %v648
    %712 = vmatpush1.bf16.msra.mxu0 %v647
    %713 = vmatprep.subr.bf16.mxu0 %v650
    %714 = vmatpush1.bf16.msra.mxu0 %v649
    %715 = vmatprep.subr.bf16.mxu0 %v652
    %716 = vmatpush1.bf16.msra.mxu0 %v651
    %717 = vmatprep.subr.bf16.mxu0 %v654
    %718 = vmatpush1.bf16.msra.mxu0 %v653
    %719 = vmatprep.subr.bf16.mxu0 %v656
    %720 = vmatpush1.bf16.msra.mxu0 %v655
    %721 = vmatprep.subr.bf16.mxu0 %v658
    %722 = vmatpush1.bf16.msra.mxu0 %v657
    %723 = vmatprep.subr.bf16.mxu0 %v660
    %724 = vmatpush1.bf16.msra.mxu0 %v659
    %725 = vmatprep.subr.bf16.mxu0 %v662
    %726 = vmatpush1.bf16.msra.mxu0 %v661
    %727 = vmatprep.subr.bf16.mxu0 %v664
    %728 = vmatpush1.bf16.msra.mxu0 %v663
    %729 = vmatprep.subr.bf16.mxu0 %v666
    %730 = vmatpush1.bf16.msra.mxu0 %v665
    %731 = vmatprep.subr.bf16.mxu0 %v668
    %732 = vmatpush1.bf16.msra.mxu0 %v667
    %733 = vmatprep.mubr.bf16.mxu0 %v251
    %734 = vmatmul.mubr.bf16.gmra.mrb[0].mxu0 %v250
    %v735 = vpop.f32.mrb[0].mxu0
    %v736 = vadd.f32 %v534, %v735
    %v737 = vpop.f32.mrb[0].mxu0
    %v738 = vadd.f32 %v538, %v737
    %v739 = vpop.f32.mrb[0].mxu0
    %v740 = vpop.f32.mrb[0].mxu0
    %741 = vdwg.mxu0
    %v742 = vmax.f32 %v736, 0.0
    %v743 = vmax.f32 %v738, 0.0
    %v745 = vlaneseq
    %v746 = vshrl.u32 %v745, 7
    %v747 = vsub.s32 0, %v746
    %v748 = vrot.slane %v87, %v747
    %v749 = vlaneseq
    %v750 = vshrl.u32 %v749, 7
    %v751 = vsub.s32 1, %v750
    %v752 = vrot.slane %v87, %v751
    %v755 = vmul.f32 %v528, %v748
    %v756 = vmul.f32 %v529, %v752
    %v757 = vadd.f32 %v755, %v756
    %758 = vadd.xlane.f32.xlu0 %v757
    %v759 = vpop.xlane.xlu0 %758
    %v761 = vlaneseq
    %v762 = vshrl.u32 %v761, 7
    %v763 = vsub.s32 0, %v762
    %v764 = vrot.slane %v88, %v763
    %v765 = vlaneseq
    %v766 = vshrl.u32 %v765, 7
    %v767 = vsub.s32 1, %v766
    %v768 = vrot.slane %v88, %v767
    %v771 = vmul.f32 %v742, %v764
    %v772 = vmul.f32 %v743, %v768
    %v773 = vadd.f32 %v771, %v772
    %774 = vadd.xlane.f32.xlu0 %v773
    %v775 = vpop.xlane.xlu0 %774
    %vm776 = vcmask 7168
    %v777 = vsel %vm776, %v759, %v775
    %v778 = vld [vmem:[%s5] sm:$0x1]
    %v780 = vlaneseq
    %v781 = vshrl.u32 %v780, 7
    %v782 = vsub.s32 0, %v781
    %v783 = vrot.slane %v778, %v782
    %v785 = vadd.f32 %v777, %v783
    %vm786 = vcmask 15360
    %787 = vst.msk [vmem:[%s6] sm:$0xff] %vm786, %v785
    // Predicated region
    $region42: #{tpu_custom_call.1} parent=1 // pred_check
      _
    $region43: #{tpu_custom_call.1} parent=1 // pred_check_branch
      %789 = sbr.rel (0) target = $region45
    $region44: #{tpu_custom_call.1} parent=1 // pred_region
      _
    $region45: #{tpu_custom_call.1} parent=1 // pred_fallthru
      _
    // Predicated region
    $region46: #{tpu_custom_call.1} parent=1 // pred_check
      _
    $region47: #{tpu_custom_call.1} parent=1 // pred_check_branch
      %791 = sbr.rel (0) target = $region49
    $region48: #{tpu_custom_call.1} parent=1 // pred_region
      _
    $region49: #{tpu_custom_call.1} parent=1 // pred_fallthru
      _
    %792 = vsyncpa [#allocation3], 1
    %793 = vsyncpa [#allocation5], 1
    %794 = vsyncpa [#allocation8], 1

</llo_original>
